<compile_context>
chip_gen: v6e
topology: v6e:2x2x1
jax: 0.10.0
libtpu: 0.0.40
codegen_flags: <defaults>
</compile_context>

<pallas_src>
import jax
import jax.numpy as jnp
from jax.experimental import pallas as pl
from jax.experimental.pallas import tpu as pltpu

_NEG_LARGE = -1e30  # masks padded logit columns: exp(-1e30 - max) -> 0 in f32


def _classifier_kernel(x_ref, w_ref, b_ref, o_ref):
    # x_ref: [TB, d_in], w_ref: [d_in, d_out_p] (pre-transposed), b_ref: [1, d_out_p]
    # (f32), o_ref: [TB, d_out_p] (f32).
    d_in = x_ref.shape[-1]

    if d_in < 8:
        # Tiny reduction dim: the MXU would be <2% utilized and adds push/pop
        # latency per grid step.  Do d_in broadcast FMAs on the VPU instead.
        x = x_ref[...].astype(jnp.float32)
        w = w_ref[...].astype(jnp.float32)
        logits = b_ref[...]                              # [1, d_out_p] f32
        for k in range(d_in):                            # static, unrolled
            logits = logits + x[:, k:k + 1] * w[k:k + 1, :]
    else:
        # MXU path (bf16 inputs hit the native bf16 systolic array).
        logits = (
            jnp.dot(x_ref[...], w_ref[...], preferred_element_type=jnp.float32)
            + b_ref[...]
        )

    # Numerically-stable softmax over the (lane) output axis, all in f32.
    m = jnp.max(logits, axis=1, keepdims=True)
    e = jnp.exp(logits - m)
    denom = jnp.sum(e, axis=1, keepdims=True)
    # Exact divide: rows must sum to 1 (approx reciprocal was only ~1e-3 accurate).
    o_ref[...] = (e / denom).astype(o_ref.dtype)


def _round_up(x, m):
    return (x + m - 1) // m * m


def _pick_batch_tile(B, block_b):
    """Largest multiple-of-8 tile <= block_b, keeping >= 2 grid steps when B allows
    (so the 'parallel' axis can shard across v7x's two TensorCores)."""
    tb = _round_up(max(8, min(block_b, B)), 8)
    if tb >= _round_up(B, 8) and B > 8:
        tb = _round_up((B + 1) // 2, 8)
    return tb


def prepare_classifier_params(weight, bias, in_dtype=jnp.bfloat16):
    """One-time parameter prep (hoisted out of the per-call path).

    weight: [d_out, d_in] (PyTorch nn.Linear convention), bias: [d_out].
    Returns (w_t, b_pad, d_out) with w_t pre-transposed to [d_in, d_out_p] and
    d_out padded up to a multiple of 128 lanes; padded bias columns are -1e30 so
    softmax gives them exactly 0 probability.
    """
    d_out, d_in = weight.shape
    d_out_p = _round_up(d_out, 128)
    w_t = (
        jnp.zeros((d_in, d_out_p), in_dtype)
        .at[:, :d_out]
        .set(weight.T.astype(in_dtype))
    )
    b_pad = (
        jnp.full((1, d_out_p), _NEG_LARGE, jnp.float32)
        .at[0, :d_out]
        .set(bias.astype(jnp.float32))
    )
    return w_t, b_pad, d_out


def simple_classifier_apply(x, w_t, b_pad, d_out, *, block_b=1024):
    """softmax(x @ W^T + b, axis=1) using prepared params (see prepare_classifier_params)."""
    B, d_in = x.shape
    d_out_p = w_t.shape[1]
    in_dtype = w_t.dtype

    tb = _pick_batch_tile(B, block_b)
    b_p = _round_up(B, tb)

    x_in = x.astype(in_dtype)
    if b_p != B:
        # Only pad when the tile doesn't divide B (padding is an extra HBM copy of x).
        x_in = jnp.zeros((b_p, d_in), in_dtype).at[:B, :].set(x_in)

    out_p = pl.pallas_call(
        _classifier_kernel,
        out_shape=jax.ShapeDtypeStruct((b_p, d_out_p), jnp.float32),
        grid_spec=pl.GridSpec(
            grid=(b_p // tb,),
            in_specs=[
                pl.BlockSpec((tb, d_in), lambda i: (i, 0)),        # x: tiled over B
                pl.BlockSpec((d_in, d_out_p), lambda i: (0, 0)),   # weight: resident
                pl.BlockSpec((1, d_out_p), lambda i: (0, 0)),      # bias:   resident
            ],
            out_specs=pl.BlockSpec((tb, d_out_p), lambda i: (i, 0)),
        ),
        compiler_params=pltpu.CompilerParams(
            # Batch tiles are independent -> shardable across v7x's 2 TensorCores;
            # harmless on single-TC v5e/v6e.
            dimension_semantics=("parallel",),
        ),
    )(x_in, w_t, b_pad)

    # Strip lane/batch padding back to the PyTorch-visible shape.
    return out_p[:B, :d_out]


def simple_classifier(x, weight, bias, *, block_b=1024, in_dtype=jnp.bfloat16):
    """Convenience wrapper: prepares params then applies (prefer preparing once)."""
    w_t, b_pad, d_out = prepare_classifier_params(weight, bias, in_dtype=in_dtype)
    return simple_classifier_apply(x, w_t, b_pad, d_out, block_b=block_b)


def _reference(x, weight, bias):
    logits = x @ weight.T + bias
    return jax.nn.softmax(logits, axis=1)


if __name__ == "__main__":
    input_dim = 2
    output_dim = 2
    batch = 256  # tile picker -> two 128-row "parallel" grid steps, no x padding

    key = jax.random.PRNGKey(0)
    kx, kw, kb = jax.random.split(key, 3)

    # Deterministic synthetic parameters (shapes per nn.Linear(input_dim, output_dim)).
    x = jax.random.normal(kx, (batch, input_dim), dtype=jnp.float32)
    bound = 1.0 / (input_dim ** 0.5)
    weight = jax.random.uniform(
        kw, (output_dim, input_dim), minval=-bound, maxval=bound, dtype=jnp.float32
    )
    bias = jax.random.uniform(
        kb, (output_dim,), minval=-bound, maxval=bound, dtype=jnp.float32
    )

    ref = _reference(x, weight, bias)

    # 1) Bit-accurate path (f32 inputs): tight tolerance validates the kernel math.
    w_t32, b_pad32, d_out = prepare_classifier_params(weight, bias, in_dtype=jnp.float32)
    out32 = jax.block_until_ready(simple_classifier_apply(x, w_t32, b_pad32, d_out))
    assert out32.shape == (batch, output_dim)
    assert jnp.allclose(out32, ref, atol=1e-5, rtol=1e-5), "f32 path mismatch vs reference"
    assert jnp.allclose(jnp.sum(out32, axis=1), 1.0, atol=1e-5), "softmax rows must sum to 1"

    # 2) Default bf16-input path (halves HBM DMA bytes at scale); softmax stays f32,
    #    so rows still sum to 1 exactly — only the logits carry bf16 rounding.
    out_bf16 = jax.block_until_ready(simple_classifier(x, weight, bias))
    assert out_bf16.shape == (batch, output_dim)
    assert jnp.allclose(out_bf16, ref, atol=2e-2, rtol=2e-2), "bf16 path mismatch vs reference"
    assert jnp.allclose(jnp.sum(out_bf16, axis=1), 1.0, atol=1e-5), "softmax rows must sum to 1"

    print("KERNEL_OK")
</pallas_src>

<mosaic_0001>
module attributes {stable_mosaic.version = 11 : i64} {
  func.func @_classifier_kernel(%arg0: i32, %arg1: memref<128x2xf32, #tpu.memory_space<vmem>>, %arg2: memref<2x128xf32, #tpu.memory_space<vmem>>, %arg3: memref<1x128xf32, #tpu.memory_space<vmem>>, %arg4: memref<128x128xf32, #tpu.memory_space<vmem>>) attributes {dimension_semantics = [#tpu.dimension_semantics<parallel>], iteration_bounds = array<i64: 2>, scalar_prefetch = 0 : i64, scratch_operands = 0 : i64, tpu.core_type = #tpu.core_type<tc>, window_params = [{transform_indices = @transform_0, window_bounds = array<i64: 128, 2>}, {pipeline_mode = #tpu.pipeline_mode<synchronous>, transform_indices = @transform_1, window_bounds = array<i64: 2, 128>}, {pipeline_mode = #tpu.pipeline_mode<synchronous>, transform_indices = @transform_2, window_bounds = array<i64: 1, 128>}, {transform_indices = @transform_3, window_bounds = array<i64: 128, 128>}]} {
    %c0 = arith.constant 0 : index
    %c0_0 = arith.constant 0 : index
    %0 = vector.load %arg1[%c0, %c0_0] : memref<128x2xf32, #tpu.memory_space<vmem>>, vector<128x2xf32>
    %c0_1 = arith.constant 0 : index
    %c0_2 = arith.constant 0 : index
    %1 = vector.load %arg2[%c0_1, %c0_2] : memref<2x128xf32, #tpu.memory_space<vmem>>, vector<2x128xf32>
    %c0_3 = arith.constant 0 : index
    %c0_4 = arith.constant 0 : index
    %2 = vector.load %arg3[%c0_3, %c0_4] : memref<1x128xf32, #tpu.memory_space<vmem>>, vector<1x128xf32>
    %3 = vector.extract_strided_slice %0 {offsets = [0, 0], sizes = [128, 1], strides = [1, 1]} : vector<128x2xf32> to vector<128x1xf32>
    %4 = vector.extract_strided_slice %1 {offsets = [0, 0], sizes = [1, 128], strides = [1, 1]} : vector<2x128xf32> to vector<1x128xf32>
    %5 = vector.broadcast %3 : vector<128x1xf32> to vector<128x128xf32>
    %6 = vector.broadcast %4 : vector<1x128xf32> to vector<128x128xf32>
    %7 = arith.mulf %5, %6 : vector<128x128xf32>
    %8 = vector.broadcast %2 : vector<1x128xf32> to vector<128x128xf32>
    %9 = arith.addf %8, %7 : vector<128x128xf32>
    %10 = vector.extract_strided_slice %0 {offsets = [0, 1], sizes = [128, 1], strides = [1, 1]} : vector<128x2xf32> to vector<128x1xf32>
    %11 = vector.extract_strided_slice %1 {offsets = [1, 0], sizes = [1, 128], strides = [1, 1]} : vector<2x128xf32> to vector<1x128xf32>
    %12 = vector.broadcast %10 : vector<128x1xf32> to vector<128x128xf32>
    %13 = vector.broadcast %11 : vector<1x128xf32> to vector<128x128xf32>
    %14 = arith.mulf %12, %13 : vector<128x128xf32>
    %15 = arith.addf %9, %14 : vector<128x128xf32>
    %cst = arith.constant dense<0xFF800000> : vector<128xf32>
    %16 = vector.multi_reduction <maximumf>, %15, %cst [1] : vector<128x128xf32> to vector<128xf32>
    %17 = vector.shape_cast %16 : vector<128xf32> to vector<128x1xf32>
    %18 = vector.broadcast %17 : vector<128x1xf32> to vector<128x128xf32>
    %19 = arith.subf %15, %18 : vector<128x128xf32>
    %20 = math.exp %19 : vector<128x128xf32>
    %cst_5 = arith.constant dense<0.000000e+00> : vector<128xf32>
    %21 = vector.multi_reduction <add>, %20, %cst_5 [1] : vector<128x128xf32> to vector<128xf32>
    %22 = vector.shape_cast %21 : vector<128xf32> to vector<128x1xf32>
    %23 = vector.broadcast %22 : vector<128x1xf32> to vector<128x128xf32>
    %24 = arith.divf %20, %23 : vector<128x128xf32>
    %c0_6 = arith.constant 0 : index
    %c0_7 = arith.constant 0 : index
    %25 = vector.load %arg4[%c0_6, %c0_7] : memref<128x128xf32, #tpu.memory_space<vmem>>, vector<128x128xf32>
    tpu.vector_store %arg4[%c0_6, %c0_7], %24 {strides = array<i32>} : memref<128x128xf32, #tpu.memory_space<vmem>>, vector<128x128xf32>,
    return
  }
  func.func @transform_0(%arg0: i32) -> (i32, i32) {
    %c0_i32 = arith.constant 0 : i32
    %c0_i32_0 = arith.constant 0 : i32
    return %arg0, %c0_i32 : i32, i32
  }
  func.func @transform_1(%arg0: i32) -> (i32, i32) {
    %c0_i32 = arith.constant 0 : i32
    %c0_i32_0 = arith.constant 0 : i32
    %c0_i32_1 = arith.constant 0 : i32
    return %c0_i32, %c0_i32_0 : i32, i32
  }
  func.func @transform_2(%arg0: i32) -> (i32, i32) {
    %c0_i32 = arith.constant 0 : i32
    %c0_i32_0 = arith.constant 0 : i32
    %c0_i32_1 = arith.constant 0 : i32
    return %c0_i32, %c0_i32_0 : i32, i32
  }
  func.func @transform_3(%arg0: i32) -> (i32, i32) {
    %c0_i32 = arith.constant 0 : i32
    %c0_i32_0 = arith.constant 0 : i32
    return %arg0, %c0_i32 : i32, i32
  }
}

</mosaic_0001>

<llo_original>
// kernel: tpu_custom_call.1
$region0: #{tpu_custom_call.1}
  #allocation0 [shape = 'u32[]', space=smem, size = 0x4, offset = 0x4, fixed_abs, tag = 'smem constant byte address 0x4 - core index']
  #allocation1 [shape = 'u32[144,128]{1,0:T(1,128)}', space=vmem, size = 0x12000, scoped, tag = 'internal scratch']
  %s0 = inlined_call_operand.vmem [shape: f32[256,2], index: 0, kind: input, shape index: {}]
  %s1 = inlined_call_operand.vmem [shape: f32[2,128], index: 1, kind: input, shape index: {}]
  %s2 = inlined_call_operand.vmem [shape: f32[1,128], index: 2, kind: input, shape index: {}]
  %s3 = inlined_call_operand.hbm [shape: f32[256,128], index: 3, kind: output, shape index: {}]
  %s4 = sld [smem:[#allocation0]]
  $region45: #{tpu_custom_call.1} parent=0
    _
  %s6 = ssub.s32 1, %s4
  %s7 = scalar_select 0, %s6, %s4
  $region1: #{tpu_custom_call.1} parent=0
    #allocation2 [shape = 'u8[131072]{0}', space=vmem, size = 0x20000, scoped, tag = 'output window, operand 0']
    #allocation3 [shape = 's32[2]{0}', space=sflag, size = 0x8, scoped, tag = 'scoped memory for tpu_custom_call.1']
    %8 = vsyncpa [#allocation3], 0
    %s9 = scalar_lea.sflag [#allocation3], 1
    %10 = vsyncpa %s9, 0
    loop: start=0, step=1, limit=4
    $region2: #{tpu_custom_call.1} parent=1 // loop_pre_header
      _
    $region3: #{tpu_custom_call.1} parent=1 // loop_header
      %s12 = sphi 0, %s16
      %p13 = scmp.ge.s32.totalorder %s12, 4
      %s22 = sphi 0, %s24
      %s25 = sphi 0, %s22
      %s26 = sphi 0, %s25
      %s42 = sphi 0, %s26
      %s46 = sphi 0, %s46
      %s48 = sphi 0, %s46
      %s49 = sphi 0, %s48
      %s63 = sphi 0, %s49
      %s67 = sphi 0, %s67
      %s69 = sphi 0, %s67
      %s70 = sphi 0, %s69
      %s84 = sphi 0, %s70
      %s90 = sphi 0, %s92
      %s93 = sphi 0, %s90
      %s94 = sphi 0, %s93
      %s110 = sphi 0, %s94
    $region4: #{tpu_custom_call.1} parent=1 // loop_header_branch
      %15 = sbr.rel (%p13) target = $region8
    $region5: #{tpu_custom_call.1} parent=1 // loop_body
      %s17 = ssub.s32 %s12, 1
      %s18 = ssub.s32 %s12, 2
      %s19 = sadd.s32 %s12, 1
      %s20 = ssub.s32 %s12, %s19
      %p21 = scmp.eq.s32.totalorder %s20, 0
      %s23 = sadd.s32 %s22, 1
      %s24 = scalar_select %p21, %s22, %s23
      %p27 = pneg %p21
      %p28 = scmp.eq.s32.totalorder %s12, 1
      %p29 = por %p27, %p28
      %p30 = scmp.ne.s32.totalorder %s22, %s25
      %p31 = scmp.eq.s32.totalorder %s12, 0
      %p32 = por %p30, %p31
      %p33 = scmp.ne.s32.totalorder %s22, %s25
      %p34 = scmp.eq.s32.totalorder %s17, 1
      %p35 = por %p33, %p34
      %p36 = scmp.ne.s32.totalorder %s25, %s26
      %p37 = scmp.eq.s32.totalorder %s17, 0
      %p38 = por %p36, %p37
      %p39 = scmp.ne.s32.totalorder %s25, %s26
      %p40 = scmp.eq.s32.totalorder %s18, 1
      %p41 = por %p39, %p40
      %p43 = scmp.ne.s32.totalorder %s26, %s42
      %p44 = scmp.eq.s32.totalorder %s18, 0
      %p45 = por %p43, %p44
      %s47 = sadd.s32 %s46, 1
      %p50 = scmp.eq.s32.totalorder %s12, 1
      %p51 = scmp.ne.s32.totalorder %s46, %s48
      %p52 = scmp.eq.s32.totalorder %s12, 0
      %p53 = por %p51, %p52
      %p54 = scmp.ne.s32.totalorder %s46, %s48
      %p55 = scmp.eq.s32.totalorder %s17, 1
      %p56 = por %p54, %p55
      %p57 = scmp.ne.s32.totalorder %s48, %s49
      %p58 = scmp.eq.s32.totalorder %s17, 0
      %p59 = por %p57, %p58
      %p60 = scmp.ne.s32.totalorder %s48, %s49
      %p61 = scmp.eq.s32.totalorder %s18, 1
      %p62 = por %p60, %p61
      %p64 = scmp.ne.s32.totalorder %s49, %s63
      %p65 = scmp.eq.s32.totalorder %s18, 0
      %p66 = por %p64, %p65
      %s68 = sadd.s32 %s67, 1
      %p71 = scmp.eq.s32.totalorder %s12, 1
      %p72 = scmp.ne.s32.totalorder %s67, %s69
      %p73 = scmp.eq.s32.totalorder %s12, 0
      %p74 = por %p72, %p73
      %p75 = scmp.ne.s32.totalorder %s67, %s69
      %p76 = scmp.eq.s32.totalorder %s17, 1
      %p77 = por %p75, %p76
      %p78 = scmp.ne.s32.totalorder %s69, %s70
      %p79 = scmp.eq.s32.totalorder %s17, 0
      %p80 = por %p78, %p79
      %p81 = scmp.ne.s32.totalorder %s69, %s70
      %p82 = scmp.eq.s32.totalorder %s18, 1
      %p83 = por %p81, %p82
      %p85 = scmp.ne.s32.totalorder %s70, %s84
      %p86 = scmp.eq.s32.totalorder %s18, 0
      %p87 = por %p85, %p86
      %s88 = ssub.s32 %s12, %s19
      %p89 = scmp.eq.s32.totalorder %s88, 0
      %s91 = sadd.s32 %s90, 1
      %s92 = scalar_select %p89, %s90, %s91
      %p95 = pneg %p89
      %p96 = scmp.eq.s32.totalorder %s12, 1
      %p97 = por %p95, %p96
      %p98 = scmp.ne.s32.totalorder %s90, %s93
      %p99 = scmp.eq.s32.totalorder %s12, 0
      %p100 = por %p98, %p99
      %p101 = scmp.ne.s32.totalorder %s90, %s93
      %p102 = scmp.eq.s32.totalorder %s17, 1
      %p103 = por %p101, %p102
      %p104 = scmp.ne.s32.totalorder %s93, %s94
      %p105 = scmp.eq.s32.totalorder %s17, 0
      %p106 = por %p104, %p105
      %p107 = scmp.ne.s32.totalorder %s93, %s94
      %p108 = scmp.eq.s32.totalorder %s18, 1
      %p109 = por %p107, %p108
      %p111 = scmp.ne.s32.totalorder %s94, %s110
      %p112 = scmp.eq.s32.totalorder %s18, 0
      %p113 = por %p111, %p112
      %p114 = scmp.le.s32.totalorder 1, %s12
      %p115 = scmp.lt.s32.totalorder %s12, 3
      %p116 = pnand %p114, %p115
      %p117 = pneg %p116
      // Predicated region
      $region9: #{tpu_custom_call.1} parent=5 // pred_check
        _
      $region10: #{tpu_custom_call.1} parent=5 // pred_check_branch
        %119 = sbr.rel (%p116) target = $region12
      $region11: #{tpu_custom_call.1} parent=5 // pred_region
        %s120 = ssub.s32 %s12, 1
        // Predicated region
        $region13: #{tpu_custom_call.1} parent=11 // pred_check
          %p121 = pneg %p59
        $region14: #{tpu_custom_call.1} parent=11 // pred_check_branch
          %123 = sbr.rel (%p121) target = $region16
        $region15: #{tpu_custom_call.1} parent=11 // pred_region
          _
        $region16: #{tpu_custom_call.1} parent=11 // pred_fallthru
          _
        // Predicated region
        $region17: #{tpu_custom_call.1} parent=11 // pred_check
          %p124 = pneg %p80
        $region18: #{tpu_custom_call.1} parent=11 // pred_check_branch
          %126 = sbr.rel (%p124) target = $region20
        $region19: #{tpu_custom_call.1} parent=11 // pred_region
          _
        $region20: #{tpu_custom_call.1} parent=11 // pred_fallthru
          _
      $region12: #{tpu_custom_call.1} parent=5 // pred_fallthru
        _
      %p127 = scmp.lt.s32.totalorder %s12, 2
      // Predicated region
      $region21: #{tpu_custom_call.1} parent=5 // pred_check
        %p128 = pneg %p127
      $region22: #{tpu_custom_call.1} parent=5 // pred_check_branch
        %130 = sbr.rel (%p128) target = $region24
      $region23: #{tpu_custom_call.1} parent=5 // pred_region
        // Predicated region
        $region25: #{tpu_custom_call.1} parent=23 // pred_check
          %p131 = pneg %p32
        $region26: #{tpu_custom_call.1} parent=23 // pred_check_branch
          %133 = sbr.rel (%p131) target = $region28
        $region27: #{tpu_custom_call.1} parent=23 // pred_region
          %s134 = smul.u32 16, %s12
          %p135 = scmp.lt.s32.totalorder %s134, 31
          %s136 = scalar_select %p135, %s134, 31
          %s137 = smul.addr %s136, 8
          %s138 = scalar_lea.vmem %s0, %s137
          %s139 = smul.u32 16, %s12
        $region28: #{tpu_custom_call.1} parent=23 // pred_fallthru
          _
      $region24: #{tpu_custom_call.1} parent=5 // pred_fallthru
        _
      %p140 = scmp.le.s32.totalorder 1, %s12
      %p141 = scmp.lt.s32.totalorder %s12, 3
      %p142 = pnand %p140, %p141
      %p143 = pneg %p142
      // Predicated region
      $region29: #{tpu_custom_call.1} parent=5 // pred_check
        _
      $region30: #{tpu_custom_call.1} parent=5 // pred_check_branch
        %145 = sbr.rel (%p142) target = $region32
      $region31: #{tpu_custom_call.1} parent=5 // pred_region
        %s146 = ssub.s32 %s12, 1
        %s147 = smul.u32 16, %s17
        %p148 = scmp.lt.s32.totalorder %s147, 31
        %s149 = scalar_select %p148, %s147, 31
        %s150 = smul.addr %s149, 8
        %s151 = scalar_lea.vmem %s0, %s150
        %p152 = pneg %p38
        %p153 = pneg %p35
        %p154 = pneg %p59
        %p155 = pneg %p56
        %p156 = pneg %p80
        %p157 = pneg %p77
        %p158 = pneg %p106
        %p159 = pneg %p103
        %s160 = sand.u32 %s93, 1
        %s161 = scalar_lea.sflag [#allocation3], %s160
        %s162 = sand.u32 %s93, 1
        %s163 = smul.addr %s162, 128
        %s164 = scalar_lea.vmem [#allocation2], %s163
        %s165 = smul.u32 16, %s17
        %p166 = scmp.lt.s32.totalorder %s165, 31
        %s167 = scalar_select %p166, %s165, 31
        %s168 = smul.addr %s167, 8
        %s169 = scalar_lea.vmem %s0, %s168
        %s170 = smul.u32 16, %s17
        %s171 = smul.u32 16, %s17
        %v172 = vld [vmem:[%s169] sm:$0xff]
        %v173 = vld [vmem:[%s169 + $0x8] sm:$0xff]
        %v174 = vld [vmem:[%s169 + $0x10] sm:$0xff]
        %v175 = vld [vmem:[%s169 + $0x18] sm:$0xff]
        %v176 = vld [vmem:[%s169 + $0x20] sm:$0xff]
        %v177 = vld [vmem:[%s169 + $0x28] sm:$0xff]
        %v178 = vld [vmem:[%s169 + $0x30] sm:$0xff]
        %v179 = vld [vmem:[%s169 + $0x38] sm:$0xff]
        %v180 = vld [vmem:[%s169 + $0x40] sm:$0xff]
        %v181 = vld [vmem:[%s169 + $0x48] sm:$0xff]
        %v182 = vld [vmem:[%s169 + $0x50] sm:$0xff]
        %v183 = vld [vmem:[%s169 + $0x58] sm:$0xff]
        %v184 = vld [vmem:[%s169 + $0x60] sm:$0xff]
        %v185 = vld [vmem:[%s169 + $0x68] sm:$0xff]
        %v186 = vld [vmem:[%s169 + $0x70] sm:$0xff]
        %v187 = vld [vmem:[%s169 + $0x78] sm:$0xff]
        %v188 = vld [vmem:[%s1] sm:$0x3]
        %v189 = vld [vmem:[%s2] sm:$0x1]
        %191 = vset.pattern.permute.xlu0 0
        %192 = vperm.xlu0 %191, %v172
        %v193 = vpop.permute.xlu0 %192
        %196 = vset.pattern.permute.xlu0 0
        %197 = vperm.xlu0 %196, %v173
        %v198 = vpop.permute.xlu0 %197
        %201 = vset.pattern.permute.xlu0 0
        %202 = vperm.xlu0 %201, %v174
        %v203 = vpop.permute.xlu0 %202
        %206 = vset.pattern.permute.xlu0 0
        %207 = vperm.xlu0 %206, %v175
        %v208 = vpop.permute.xlu0 %207
        %211 = vset.pattern.permute.xlu0 0
        %212 = vperm.xlu0 %211, %v176
        %v213 = vpop.permute.xlu0 %212
        %216 = vset.pattern.permute.xlu0 0
        %217 = vperm.xlu0 %216, %v177
        %v218 = vpop.permute.xlu0 %217
        %221 = vset.pattern.permute.xlu0 0
        %222 = vperm.xlu0 %221, %v178
        %v223 = vpop.permute.xlu0 %222
        %226 = vset.pattern.permute.xlu0 0
        %227 = vperm.xlu0 %226, %v179
        %v228 = vpop.permute.xlu0 %227
        %231 = vset.pattern.permute.xlu0 0
        %232 = vperm.xlu0 %231, %v180
        %v233 = vpop.permute.xlu0 %232
        %236 = vset.pattern.permute.xlu0 0
        %237 = vperm.xlu0 %236, %v181
        %v238 = vpop.permute.xlu0 %237
        %241 = vset.pattern.permute.xlu0 0
        %242 = vperm.xlu0 %241, %v182
        %v243 = vpop.permute.xlu0 %242
        %246 = vset.pattern.permute.xlu0 0
        %247 = vperm.xlu0 %246, %v183
        %v248 = vpop.permute.xlu0 %247
        %251 = vset.pattern.permute.xlu0 0
        %252 = vperm.xlu0 %251, %v184
        %v253 = vpop.permute.xlu0 %252
        %256 = vset.pattern.permute.xlu0 0
        %257 = vperm.xlu0 %256, %v185
        %v258 = vpop.permute.xlu0 %257
        %261 = vset.pattern.permute.xlu0 0
        %262 = vperm.xlu0 %261, %v186
        %v263 = vpop.permute.xlu0 %262
        %266 = vset.pattern.permute.xlu0 0
        %267 = vperm.xlu0 %266, %v187
        %v268 = vpop.permute.xlu0 %267
        %v270 = vlaneseq
        %v271 = vshrl.u32 %v270, 7
        %v272 = vsub.s32 0, %v271
        %v273 = vrot.slane %v188, %v272
        %v274 = vmul.f32 %v193, %v273
        %v275 = vmul.f32 %v198, %v273
        %v276 = vmul.f32 %v203, %v273
        %v277 = vmul.f32 %v208, %v273
        %v278 = vmul.f32 %v213, %v273
        %v279 = vmul.f32 %v218, %v273
        %v280 = vmul.f32 %v223, %v273
        %v281 = vmul.f32 %v228, %v273
        %v282 = vmul.f32 %v233, %v273
        %v283 = vmul.f32 %v238, %v273
        %v284 = vmul.f32 %v243, %v273
        %v285 = vmul.f32 %v248, %v273
        %v286 = vmul.f32 %v253, %v273
        %v287 = vmul.f32 %v258, %v273
        %v288 = vmul.f32 %v263, %v273
        %v289 = vmul.f32 %v268, %v273
        %v291 = vlaneseq
        %v292 = vshrl.u32 %v291, 7
        %v293 = vsub.s32 0, %v292
        %v294 = vrot.slane %v189, %v293
        %v296 = vadd.f32 %v294, %v274
        %v297 = vadd.f32 %v294, %v275
        %v298 = vadd.f32 %v294, %v276
        %v299 = vadd.f32 %v294, %v277
        %v300 = vadd.f32 %v294, %v278
        %v301 = vadd.f32 %v294, %v279
        %v302 = vadd.f32 %v294, %v280
        %v303 = vadd.f32 %v294, %v281
        %v304 = vadd.f32 %v294, %v282
        %v305 = vadd.f32 %v294, %v283
        %v306 = vadd.f32 %v294, %v284
        %v307 = vadd.f32 %v294, %v285
        %v308 = vadd.f32 %v294, %v286
        %v309 = vadd.f32 %v294, %v287
        %v310 = vadd.f32 %v294, %v288
        %v311 = vadd.f32 %v294, %v289
        %312 = vset.pattern.permute.xlu0 1
        %313 = vperm.xlu0 %312, %v172
        %v314 = vpop.permute.xlu0 %313
        %316 = vset.pattern.permute.xlu0 1
        %317 = vperm.xlu0 %316, %v173
        %v318 = vpop.permute.xlu0 %317
        %320 = vset.pattern.permute.xlu0 1
        %321 = vperm.xlu0 %320, %v174
        %v322 = vpop.permute.xlu0 %321
        %324 = vset.pattern.permute.xlu0 1
        %325 = vperm.xlu0 %324, %v175
        %v326 = vpop.permute.xlu0 %325
        %328 = vset.pattern.permute.xlu0 1
        %329 = vperm.xlu0 %328, %v176
        %v330 = vpop.permute.xlu0 %329
        %332 = vset.pattern.permute.xlu0 1
        %333 = vperm.xlu0 %332, %v177
        %v334 = vpop.permute.xlu0 %333
        %336 = vset.pattern.permute.xlu0 1
        %337 = vperm.xlu0 %336, %v178
        %v338 = vpop.permute.xlu0 %337
        %340 = vset.pattern.permute.xlu0 1
        %341 = vperm.xlu0 %340, %v179
        %v342 = vpop.permute.xlu0 %341
        %344 = vset.pattern.permute.xlu0 1
        %345 = vperm.xlu0 %344, %v180
        %v346 = vpop.permute.xlu0 %345
        %348 = vset.pattern.permute.xlu0 1
        %349 = vperm.xlu0 %348, %v181
        %v350 = vpop.permute.xlu0 %349
        %352 = vset.pattern.permute.xlu0 1
        %353 = vperm.xlu0 %352, %v182
        %v354 = vpop.permute.xlu0 %353
        %356 = vset.pattern.permute.xlu0 1
        %357 = vperm.xlu0 %356, %v183
        %v358 = vpop.permute.xlu0 %357
        %360 = vset.pattern.permute.xlu0 1
        %361 = vperm.xlu0 %360, %v184
        %v362 = vpop.permute.xlu0 %361
        %364 = vset.pattern.permute.xlu0 1
        %365 = vperm.xlu0 %364, %v185
        %v366 = vpop.permute.xlu0 %365
        %368 = vset.pattern.permute.xlu0 1
        %369 = vperm.xlu0 %368, %v186
        %v370 = vpop.permute.xlu0 %369
        %372 = vset.pattern.permute.xlu0 1
        %373 = vperm.xlu0 %372, %v187
        %v374 = vpop.permute.xlu0 %373
        %v376 = vlaneseq
        %v377 = vshrl.u32 %v376, 7
        %v378 = vsub.s32 1, %v377
        %v379 = vrot.slane %v188, %v378
        %v380 = vmul.f32 %v314, %v379
        %v381 = vmul.f32 %v318, %v379
        %v382 = vmul.f32 %v322, %v379
        %v383 = vmul.f32 %v326, %v379
        %v384 = vmul.f32 %v330, %v379
        %v385 = vmul.f32 %v334, %v379
        %v386 = vmul.f32 %v338, %v379
        %v387 = vmul.f32 %v342, %v379
        %v388 = vmul.f32 %v346, %v379
        %v389 = vmul.f32 %v350, %v379
        %v390 = vmul.f32 %v354, %v379
        %v391 = vmul.f32 %v358, %v379
        %v392 = vmul.f32 %v362, %v379
        %v393 = vmul.f32 %v366, %v379
        %v394 = vmul.f32 %v370, %v379
        %v395 = vmul.f32 %v374, %v379
        %v396 = vadd.f32 %v296, %v380
        %v397 = vadd.f32 %v297, %v381
        %v398 = vadd.f32 %v298, %v382
        %v399 = vadd.f32 %v299, %v383
        %v400 = vadd.f32 %v300, %v384
        %v401 = vadd.f32 %v301, %v385
        %v402 = vadd.f32 %v302, %v386
        %v403 = vadd.f32 %v303, %v387
        %v404 = vadd.f32 %v304, %v388
        %v405 = vadd.f32 %v305, %v389
        %v406 = vadd.f32 %v306, %v390
        %v407 = vadd.f32 %v307, %v391
        %v408 = vadd.f32 %v308, %v392
        %v409 = vadd.f32 %v309, %v393
        %v410 = vadd.f32 %v310, %v394
        %v411 = vadd.f32 %v311, %v395
        %412 = vmax.xlane.f32.xlu0 %v396
        %v413 = vpop.xlane.xlu0 %412
        %414 = vmax.xlane.f32.xlu0 %v397
        %v415 = vpop.xlane.xlu0 %414
        %416 = vmax.xlane.f32.xlu0 %v398
        %v417 = vpop.xlane.xlu0 %416
        %418 = vmax.xlane.f32.xlu0 %v399
        %v419 = vpop.xlane.xlu0 %418
        %420 = vmax.xlane.f32.xlu0 %v400
        %v421 = vpop.xlane.xlu0 %420
        %422 = vmax.xlane.f32.xlu0 %v401
        %v423 = vpop.xlane.xlu0 %422
        %424 = vmax.xlane.f32.xlu0 %v402
        %v425 = vpop.xlane.xlu0 %424
        %426 = vmax.xlane.f32.xlu0 %v403
        %v427 = vpop.xlane.xlu0 %426
        %428 = vmax.xlane.f32.xlu0 %v404
        %v429 = vpop.xlane.xlu0 %428
        %430 = vmax.xlane.f32.xlu0 %v405
        %v431 = vpop.xlane.xlu0 %430
        %432 = vmax.xlane.f32.xlu0 %v406
        %v433 = vpop.xlane.xlu0 %432
        %434 = vmax.xlane.f32.xlu0 %v407
        %v435 = vpop.xlane.xlu0 %434
        %436 = vmax.xlane.f32.xlu0 %v408
        %v437 = vpop.xlane.xlu0 %436
        %438 = vmax.xlane.f32.xlu0 %v409
        %v439 = vpop.xlane.xlu0 %438
        %440 = vmax.xlane.f32.xlu0 %v410
        %v441 = vpop.xlane.xlu0 %440
        %442 = vmax.xlane.f32.xlu0 %v411
        %v443 = vpop.xlane.xlu0 %442
        %v444 = vsub.f32 %v396, %v413
        %v445 = vsub.f32 %v397, %v415
        %v446 = vsub.f32 %v398, %v417
        %v447 = vsub.f32 %v399, %v419
        %v448 = vsub.f32 %v400, %v421
        %v449 = vsub.f32 %v401, %v423
        %v450 = vsub.f32 %v402, %v425
        %v451 = vsub.f32 %v403, %v427
        %v452 = vsub.f32 %v404, %v429
        %v453 = vsub.f32 %v405, %v431
        %v454 = vsub.f32 %v406, %v433
        %v455 = vsub.f32 %v407, %v435
        %v456 = vsub.f32 %v408, %v437
        %v457 = vsub.f32 %v409, %v439
        %v458 = vsub.f32 %v410, %v441
        %v459 = vsub.f32 %v411, %v443
        %v460 = vmul.f32 %v444, 1.442695
        %v461 = vpow.pop %v460
        %v462 = vmul.f32 %v445, 1.442695
        %v463 = vpow.pop %v462
        %v464 = vmul.f32 %v446, 1.442695
        %v465 = vpow.pop %v464
        %v466 = vmul.f32 %v447, 1.442695
        %v467 = vpow.pop %v466
        %v468 = vmul.f32 %v448, 1.442695
        %v469 = vpow.pop %v468
        %v470 = vmul.f32 %v449, 1.442695
        %v471 = vpow.pop %v470
        %v472 = vmul.f32 %v450, 1.442695
        %v473 = vpow.pop %v472
        %v474 = vmul.f32 %v451, 1.442695
        %v475 = vpow.pop %v474
        %v476 = vmul.f32 %v452, 1.442695
        %v477 = vpow.pop %v476
        %v478 = vmul.f32 %v453, 1.442695
        %v479 = vpow.pop %v478
        %v480 = vmul.f32 %v454, 1.442695
        %v481 = vpow.pop %v480
        %v482 = vmul.f32 %v455, 1.442695
        %v483 = vpow.pop %v482
        %v484 = vmul.f32 %v456, 1.442695
        %v485 = vpow.pop %v484
        %v486 = vmul.f32 %v457, 1.442695
        %v487 = vpow.pop %v486
        %v488 = vmul.f32 %v458, 1.442695
        %v489 = vpow.pop %v488
        %v490 = vmul.f32 %v459, 1.442695
        %v491 = vpow.pop %v490
        %492 = vadd.xlane.f32.xlu0 %v461
        %v493 = vpop.xlane.xlu0 %492
        %494 = vadd.xlane.f32.xlu0 %v463
        %v495 = vpop.xlane.xlu0 %494
        %496 = vadd.xlane.f32.xlu0 %v465
        %v497 = vpop.xlane.xlu0 %496
        %498 = vadd.xlane.f32.xlu0 %v467
        %v499 = vpop.xlane.xlu0 %498
        %500 = vadd.xlane.f32.xlu0 %v469
        %v501 = vpop.xlane.xlu0 %500
        %502 = vadd.xlane.f32.xlu0 %v471
        %v503 = vpop.xlane.xlu0 %502
        %504 = vadd.xlane.f32.xlu0 %v473
        %v505 = vpop.xlane.xlu0 %504
        %506 = vadd.xlane.f32.xlu0 %v475
        %v507 = vpop.xlane.xlu0 %506
        %508 = vadd.xlane.f32.xlu0 %v477
        %v509 = vpop.xlane.xlu0 %508
        %510 = vadd.xlane.f32.xlu0 %v479
        %v511 = vpop.xlane.xlu0 %510
        %512 = vadd.xlane.f32.xlu0 %v481
        %v513 = vpop.xlane.xlu0 %512
        %514 = vadd.xlane.f32.xlu0 %v483
        %v515 = vpop.xlane.xlu0 %514
        %516 = vadd.xlane.f32.xlu0 %v485
        %v517 = vpop.xlane.xlu0 %516
        %518 = vadd.xlane.f32.xlu0 %v487
        %v519 = vpop.xlane.xlu0 %518
        %520 = vadd.xlane.f32.xlu0 %v489
        %v521 = vpop.xlane.xlu0 %520
        %522 = vadd.xlane.f32.xlu0 %v491
        %v523 = vpop.xlane.xlu0 %522
        %v524 = vrcp.pop %v493
        %v525 = vmul.f32 %v461, %v524
        %v526 = vrcp.pop %v495
        %v527 = vmul.f32 %v463, %v526
        %v528 = vrcp.pop %v497
        %v529 = vmul.f32 %v465, %v528
        %v530 = vrcp.pop %v499
        %v531 = vmul.f32 %v467, %v530
        %v532 = vrcp.pop %v501
        %v533 = vmul.f32 %v469, %v532
        %v534 = vrcp.pop %v503
        %v535 = vmul.f32 %v471, %v534
        %v536 = vrcp.pop %v505
        %v537 = vmul.f32 %v473, %v536
        %v538 = vrcp.pop %v507
        %v539 = vmul.f32 %v475, %v538
        %v540 = vrcp.pop %v509
        %v541 = vmul.f32 %v477, %v540
        %v542 = vrcp.pop %v511
        %v543 = vmul.f32 %v479, %v542
        %v544 = vrcp.pop %v513
        %v545 = vmul.f32 %v481, %v544
        %v546 = vrcp.pop %v515
        %v547 = vmul.f32 %v483, %v546
        %v548 = vrcp.pop %v517
        %v549 = vmul.f32 %v485, %v548
        %v550 = vrcp.pop %v519
        %v551 = vmul.f32 %v487, %v550
        %v552 = vrcp.pop %v521
        %v553 = vmul.f32 %v489, %v552
        %v554 = vrcp.pop %v523
        %v555 = vmul.f32 %v491, %v554
        %556 = vst [vmem:[%s164] sm:$0xff] %v525
        %557 = vst [vmem:[%s164 + $0x8] sm:$0xff] %v527
        %558 = vst [vmem:[%s164 + $0x10] sm:$0xff] %v529
        %559 = vst [vmem:[%s164 + $0x18] sm:$0xff] %v531
        %560 = vst [vmem:[%s164 + $0x20] sm:$0xff] %v533
        %561 = vst [vmem:[%s164 + $0x28] sm:$0xff] %v535
        %562 = vst [vmem:[%s164 + $0x30] sm:$0xff] %v537
        %563 = vst [vmem:[%s164 + $0x38] sm:$0xff] %v539
        %564 = vst [vmem:[%s164 + $0x40] sm:$0xff] %v541
        %565 = vst [vmem:[%s164 + $0x48] sm:$0xff] %v543
        %566 = vst [vmem:[%s164 + $0x50] sm:$0xff] %v545
        %567 = vst [vmem:[%s164 + $0x58] sm:$0xff] %v547
        %568 = vst [vmem:[%s164 + $0x60] sm:$0xff] %v549
        %569 = vst [vmem:[%s164 + $0x68] sm:$0xff] %v551
        %570 = vst [vmem:[%s164 + $0x70] sm:$0xff] %v553
        %571 = vst [vmem:[%s164 + $0x78] sm:$0xff] %v555
        %s572 = sand.u32 %s93, 1
        %s573 = scalar_lea.sflag [#allocation3], %s572
        %s574 = sand.u32 %s93, 1
        %s575 = smul.addr %s574, 128
        %s576 = scalar_lea.vmem [#allocation2], %s575
        // Predicated region
        $region33: #{tpu_custom_call.1} parent=31 // pred_check
          %p577 = pneg %p103
        $region34: #{tpu_custom_call.1} parent=31 // pred_check_branch
          %579 = sbr.rel (%p577) target = $region36
        $region35: #{tpu_custom_call.1} parent=31 // pred_region
          %s580 = smul.u32 16, %s17
          %s582 = ssub.s32 2048, 2048
          %583 = vsyncadd %s573, %s582
          %s584 = smul.addr %s580, 128
          %s585 = scalar_lea.hbm %s3, %s584
          %s586 = sshll.u32 %s576, 4
          %s587 = int_to_ptr.vmem [resolvable:$true] %s586
          %592 = dma.vmem_to_hbm [thread:$0]  %s587, 2048, %s585, %s573, 128, 128, 8
        $region36: #{tpu_custom_call.1} parent=31 // pred_fallthru
          _
      $region32: #{tpu_custom_call.1} parent=5 // pred_fallthru
        _
      %p593 = scmp.le.s32.totalorder 2, %s12
      // Predicated region
      $region37: #{tpu_custom_call.1} parent=5 // pred_check
        %p594 = pneg %p593
      $region38: #{tpu_custom_call.1} parent=5 // pred_check_branch
        %596 = sbr.rel (%p594) target = $region40
      $region39: #{tpu_custom_call.1} parent=5 // pred_region
        %s597 = ssub.s32 %s12, 2
        // Predicated region
        $region41: #{tpu_custom_call.1} parent=39 // pred_check
          %p598 = pneg %p109
        $region42: #{tpu_custom_call.1} parent=39 // pred_check_branch
          %600 = sbr.rel (%p598) target = $region44
        $region43: #{tpu_custom_call.1} parent=39 // pred_region
          %s601 = sand.u32 %s94, 1
          %s602 = scalar_lea.sflag [#allocation3], %s601
          %s603 = sand.u32 %s94, 1
          %s604 = smul.addr %s603, 128
          %s605 = scalar_lea.vmem [#allocation2], %s604
          %606 = dma.done %s602, 2048
        $region44: #{tpu_custom_call.1} parent=39 // pred_fallthru
          _
      $region40: #{tpu_custom_call.1} parent=5 // pred_fallthru
        _
    $region6: #{tpu_custom_call.1} parent=1 // loop_footer
      %s16 = sadd.s32 1, %s12
    $region7: #{tpu_custom_call.1} parent=1 // loop_footer_branch
      %11 = sbr.rel target = $region3
    $region8: #{tpu_custom_call.1} parent=1 // loop_exit
      _
    %607 = vsyncpa [#allocation3], 1
    %s608 = scalar_lea.sflag [#allocation3], 1
    %609 = vsyncpa %s608, 1

</llo_original>
